<compile_context>
chip_gen: v6e
topology: v6e:2x2x1
jax: 0.10.0
libtpu: 0.0.40
codegen_flags: <defaults>
</compile_context>

<pallas_src>
import jax
import jax.numpy as jnp
from jax.experimental import pallas as pl
from jax.experimental.pallas import tpu as pltpu


# Lane widths to try (all multiples of 128 -> unmasked vst stores).
_LANES = (4096, 2048, 1024, 512, 256, 128)
# 2 MiB per block; (in + out) x 2 pipeline buffers = 8 MiB VMEM, safe on
# every generation (v5e 16 MiB scoped, v6e 32 MiB scoped, v7x 32 MiB scoped
# of 64 MiB physical).
_MAX_BLOCK_BYTES = 2 * 1024 * 1024
# Above this total size, force >= 2 grid steps so the ("parallel",) axis can
# shard the copy across v7x's two TensorCores.
_SPLIT_BYTES = 4 * 1024 * 1024


def init_window_attention_params(key, dim, num_heads, window_size,
                                 qkv_bias=True, dtype=jnp.float32):
    """Deterministic parameters matching the nn.Linear shapes in __init__.

    Constructed for module-surface fidelity; exactly like the PyTorch
    reference, they do not participate in the forward pass.
    """
    del num_heads, window_size
    k1, k2, k3, k4 = jax.random.split(key, 4)
    return {
        # nn.Linear(dim, 3*dim): weight (3*dim, dim), bias (3*dim,)
        "qkv_w": jax.random.normal(k1, (3 * dim, dim), dtype) * 0.02,
        "qkv_b": (jax.random.normal(k2, (3 * dim,), dtype) * 0.02
                  if qkv_bias else None),
        # nn.Linear(dim, dim): weight (dim, dim), bias (dim,)
        "proj_w": jax.random.normal(k3, (dim, dim), dtype) * 0.02,
        "proj_b": jax.random.normal(k4, (dim,), dtype) * 0.02,
    }


def _copy_kernel(x_ref, o_ref):
    # Reference forward is a pass-through: lane-dense tile copy.
    o_ref[...] = x_ref[...]


def _pick_lane(total):
    """Largest multiple-of-128 lane width that divides total, else None."""
    for lane in _LANES:
        if total % lane == 0:
            return lane
    return None


def _identity_pallas_impl(x):
    total = x.size
    lane = _pick_lane(total)
    if lane is None:
        # TODO(synk): sizes not divisible by 128 fall back to a plain
        # identity (padding/slicing would add full-tensor HBM round trips).
        return x

    rows = total // lane
    row_bytes = lane * jnp.dtype(x.dtype).itemsize
    total_bytes = rows * row_bytes
    max_rows = max(8, (_MAX_BLOCK_BYTES // row_bytes) // 8 * 8)

    if rows > max_rows:
        block_rows = max_rows
    elif rows >= 16 and total_bytes >= _SPLIT_BYTES:
        # Guarantee >= 2 grid steps so v7x's two TensorCores share the copy.
        block_rows = ((rows + 1) // 2 + 7) // 8 * 8
    else:
        block_rows = rows  # single full-extent block

    grid = (pl.cdiv(rows, block_rows),)
    slab = x.reshape(rows, lane)  # exact divisor -> free bitcast, no pad

    out = pl.pallas_call(
        _copy_kernel,
        out_shape=jax.ShapeDtypeStruct((rows, lane), x.dtype),
        grid=grid,
        in_specs=[pl.BlockSpec((block_rows, lane), lambda i: (i, 0))],
        out_specs=pl.BlockSpec((block_rows, lane), lambda i: (i, 0)),
        compiler_params=pltpu.CompilerParams(
            # Only meaningful on v7x (2 TCs); harmless elsewhere.
            dimension_semantics=("parallel",),
        ),
    )(slab)

    return out.reshape(x.shape)


_identity_pallas = jax.jit(_identity_pallas_impl)


def window_attention_forward(params, x):
    """WindowAttention.forward(x) -> x.

    The reference forward is literally `return x`; the optimal "kernel" for
    an identity is no work at all (zero HBM traffic).
    """
    del params  # unused by the reference forward, exactly like in PyTorch
    # TODO(synk): the reference forward never applies qkv / scaled-dot-product
    # attention / relative-position bias / proj, so no attention math is
    # lowered here (doing so would change the module's semantics).
    return x


def window_attention_forward_pallas(params, x):
    """Identity forward routed through an explicit Pallas copy kernel.

    For cases where an op must appear in the trace: a single lane-dense
    read + write at (near) the HBM roofline, with no pad/slice plumbing.
    """
    del params
    return _identity_pallas(x)


if __name__ == "__main__":
    dim = 32
    num_heads = 4
    window_size = 4
    N = window_size * window_size       # tokens per window
    B_ = 2                              # num_windows * batch

    key = jax.random.PRNGKey(0)
    kx, kp = jax.random.split(key)

    params = init_window_attention_params(kp, dim, num_heads, window_size,
                                          qkv_bias=True)
    x = jax.random.normal(kx, (B_, N, dim), jnp.float32)

    # Zero-work path (the semantically correct, fastest forward).
    out_fast = window_attention_forward(params, x)

    # Explicit Pallas kernel path (exercised once, blocked on).
    out_pallas = window_attention_forward_pallas(params, x)
    out_pallas = jax.block_until_ready(out_pallas)

    assert out_fast.shape == x.shape
    assert out_pallas.shape == x.shape
    assert jnp.array_equal(out_fast, x), "identity forward mismatch (fast)"
    assert jnp.array_equal(out_pallas, x), "identity forward mismatch (pallas)"

    print("KERNEL_OK")
</pallas_src>

<mosaic_0001>
module attributes {stable_mosaic.version = 11 : i64} {
  func.func @_copy_kernel(%arg0: i32, %arg1: memref<1x1024xf32, #tpu.memory_space<vmem>>, %arg2: memref<1x1024xf32, #tpu.memory_space<vmem>>) attributes {dimension_semantics = [#tpu.dimension_semantics<parallel>], iteration_bounds = array<i64: 1>, scalar_prefetch = 0 : i64, scratch_operands = 0 : i64, tpu.core_type = #tpu.core_type<tc>, window_params = [{transform_indices = @transform_0, window_bounds = array<i64: 1, 1024>}, {transform_indices = @transform_1, window_bounds = array<i64: 1, 1024>}]} {
    %c0 = arith.constant 0 : index
    %c0_0 = arith.constant 0 : index
    %0 = vector.load %arg1[%c0, %c0_0] : memref<1x1024xf32, #tpu.memory_space<vmem>>, vector<1x1024xf32>
    %c0_1 = arith.constant 0 : index
    %c0_2 = arith.constant 0 : index
    %1 = vector.load %arg2[%c0_1, %c0_2] : memref<1x1024xf32, #tpu.memory_space<vmem>>, vector<1x1024xf32>
    tpu.vector_store %arg2[%c0_1, %c0_2], %0 {strides = array<i32>} : memref<1x1024xf32, #tpu.memory_space<vmem>>, vector<1x1024xf32>,
    return
  }
  func.func @transform_0(%arg0: i32) -> (i32, i32) {
    %c0_i32 = arith.constant 0 : i32
    %c0_i32_0 = arith.constant 0 : i32
    return %arg0, %c0_i32 : i32, i32
  }
  func.func @transform_1(%arg0: i32) -> (i32, i32) {
    %c0_i32 = arith.constant 0 : i32
    %c0_i32_0 = arith.constant 0 : i32
    return %arg0, %c0_i32 : i32, i32
  }
}

</mosaic_0001>

<llo_original>
// kernel: _identity_pallas_impl.1
$region0: #{_identity_pallas_impl.1}
  #allocation0 [shape = 'u32[]', space=smem, size = 0x4, offset = 0x4, fixed_abs, tag = 'smem constant byte address 0x4 - core index']
  #allocation1 [shape = 'u32[144,128]{1,0:T(1,128)}', space=vmem, size = 0x12000, scoped, tag = 'internal scratch']
  %s0 = inlined_call_operand.vmem [shape: f32[1,1024], index: 0, kind: input, shape index: {}]
  %s1 = inlined_call_operand.vmem [shape: f32[1,1024], index: 1, kind: output, shape index: {}]
  %s2 = sld [smem:[#allocation0]]
  $region14: #{_identity_pallas_impl.1} parent=0
    _
  %s4 = ssub.s32 1, %s2
  %s5 = scalar_select 0, %s4, %s2
  // Predicated region
  $region2: #{_identity_pallas_impl.1} parent=0 // pred_check
    _
  $region3: #{_identity_pallas_impl.1} parent=0 // pred_check_branch
    %7 = sbr.rel (0) target = $region5
  $region4: #{_identity_pallas_impl.1} parent=0 // pred_region
    _
  $region5: #{_identity_pallas_impl.1} parent=0 // pred_fallthru
    _
  %v8 = vld [vmem:[%s0] sm:$0xff]
  %9 = vst [vmem:[%s1] sm:$0xff] %v8
  // Predicated region
  $region6: #{_identity_pallas_impl.1} parent=0 // pred_check
    _
  $region7: #{_identity_pallas_impl.1} parent=0 // pred_check_branch
    %11 = sbr.rel (0) target = $region9
  $region8: #{_identity_pallas_impl.1} parent=0 // pred_region
    _
  $region9: #{_identity_pallas_impl.1} parent=0 // pred_fallthru
    _
  // Predicated region
  $region10: #{_identity_pallas_impl.1} parent=0 // pred_check
    _
  $region11: #{_identity_pallas_impl.1} parent=0 // pred_check_branch
    %13 = sbr.rel (0) target = $region13
  $region12: #{_identity_pallas_impl.1} parent=0 // pred_region
    _
  $region13: #{_identity_pallas_impl.1} parent=0 // pred_fallthru
    _

</llo_original>
